<compile_context>
chip_gen: v5e
topology: v5e:2x2
jax: 0.10.0
libtpu: 0.0.40
codegen_flags: <defaults>
</compile_context>

<pallas_src>
import functools

import jax
import jax.numpy as jnp
from jax.experimental import pallas as pl
from jax.experimental.pallas import tpu as pltpu


_HI16 = 0xFFFF0000  # keep sign + exponent + top 7 mantissa bits (exact bf16 truncation)


def _split_bf16_exact(z):
    """Split f32 `z` into 3 bf16 pieces whose f32 sum reconstructs `z` bit-exactly.

    Bit-mask truncation (not round-to-nearest casts) makes the pieces disjoint 8-bit fields of
    the 24-bit significand, so reconstruction is exact for normal values, and it drops the two
    bf16->f32 up-casts from the previous cast-based chain (VPU work matters on v7x).
    """
    mask = jnp.uint32(_HI16)
    hi_f = pltpu.bitcast(pltpu.bitcast(z, jnp.uint32) & mask, jnp.float32)
    res = z - hi_f                                    # exact: <= 16 significant bits remain
    mid_f = pltpu.bitcast(pltpu.bitcast(res, jnp.uint32) & mask, jnp.float32)
    lo_f = res - mid_f                                # exact: <= 8 significant bits remain
    # All three down-casts are exact (low 16 bits already zero / <= 8 significant bits).
    return (hi_f.astype(jnp.bfloat16),
            mid_f.astype(jnp.bfloat16),
            lo_f.astype(jnp.bfloat16))


def _coupling_kernel(z_ref, w_ref, u_ref, perm_ref, b_ref, out_ref, *,
                     hsize, shift_first, split_store):
    """Fused coupling step on one (TB, W) batch tile.

    z_ref    : (TB, W) f32   interleaved input tile
    w_ref    : (1, W)  f32   w scattered onto the 'off' lanes, zeros elsewhere
    u_ref    : (1, H)  f32   (split_store) or (1, W) zero-padded on the passive half
    perm_ref : (W, W)  bf16  0/1 de-interleave permutation (even lanes -> [:H], odd -> [H:])
    b_ref    : (1,)    f32   bias scalar (SMEM)
    out_ref  : (TB, W) f32   de-interleaved output tile
    """
    z = z_ref[...]                                                       # (TB, W)

    # prod = off @ w.T + b on the interleaved layout (w_row is zero on the 'on' lanes):
    # VPU multiply + XLU lane reduction + EUP tanh, all overlapping the MXU passes below.
    prod = jnp.sum(z * w_ref[...], axis=-1, keepdims=True) + b_ref[0]    # (TB, 1)
    t = jnp.tanh(prod)

    # Exact lane de-interleave on the MXU: 3 disjoint bf16 pieces x 0/1 permutation, f32 acc.
    p = perm_ref[...]
    z_hi, z_mid, z_lo = _split_bf16_exact(z)
    deint = jnp.dot(z_hi, p, preferred_element_type=jnp.float32)
    deint = deint + jnp.dot(z_mid, p, preferred_element_type=jnp.float32)
    deint = deint + jnp.dot(z_lo, p, preferred_element_type=jnp.float32)

    if split_store:
        # Shift only the active half; both half stores are lane-aligned (H % 128 == 0).
        shift = u_ref[...] * t                                           # (TB, H)
        if shift_first:
            out_ref[:, :hsize] = deint[:, :hsize] + shift
            out_ref[:, hsize:] = deint[:, hsize:]
        else:
            out_ref[:, :hsize] = deint[:, :hsize]
            out_ref[:, hsize:] = deint[:, hsize:] + shift
    else:
        # H not lane-aligned: full-width add with u zero-padded on the passive half.
        out_ref[...] = deint + u_ref[...] * t


def _pick_batch_tile(B, W, block_rows):
    """~2 MiB of z per grid step, >=16 grid steps when B allows, and a double-buffered
    z+out+perm working set under ~12 MiB so it fits v5e's 16 MiB default scoped VMEM
    (no vmem_limit override needed on any generation)."""
    bytes_per_row = W * 4
    perm_bytes = 2 * W * W * 2                             # (W, W) bf16, double-buffered input
    budget = 12 * 1024 * 1024 - perm_bytes
    tb_vmem_cap = max(8, budget // (4 * bytes_per_row))    # 2 buffers x (z tile + out tile)

    if block_rows is None:
        tb = max(8, (2 * 1024 * 1024) // bytes_per_row)    # ~2 MiB z tile (>=85% HBM roofline)
        if B >= 16 * 8:
            tb = min(tb, B // 16)                          # >=16 steps: pipeline + v7x's 2 TCs
    else:
        tb = block_rows
    tb = min(tb, tb_vmem_cap, B)
    if tb != B:
        tb = max(8, (tb // 8) * 8)                         # f32 sublane tiling
    return tb


def coupling_forward(z, w, b, u, r, *, block_rows=None):
    """JAX wrapper.  z: (B, W) f32, w/u: (1, W//2), b: (1,), r: static Python float."""
    r = float(r)   # r is fixed at module init; it must be static here.

    B, W = z.shape
    H = W // 2
    assert W % 2 == 0
    assert w.shape == (1, H) and u.shape == (1, H)

    z = z.astype(jnp.float32)
    wf = w.astype(jnp.float32)
    uf = u.astype(jnp.float32)
    zeros_h = jnp.zeros((1, H), jnp.float32)

    # Fold the r-branch into parameter placement; the kernel is branch-free at runtime.
    #   r >= 0.5: off = odd lanes  -> w on odd lanes ; shift lands on out[:, :H]
    #   r <  0.5: off = even lanes -> w on even lanes; shift lands on out[:, H:]
    if r >= 0.5:
        w_row = jnp.stack([zeros_h, wf], axis=-1).reshape(1, W)
        shift_first = True
    else:
        w_row = jnp.stack([wf, zeros_h], axis=-1).reshape(1, W)
        shift_first = False

    # Shift only the active half when H is lane-aligned (saves half the broadcast-mul/add).
    split_store = (H % 128 == 0) and (H >= 128)
    if split_store:
        u_in = uf                                                        # (1, H)
    else:
        u_in = (jnp.concatenate([uf, zeros_h], axis=1) if shift_first
                else jnp.concatenate([zeros_h, uf], axis=1))             # (1, W)

    # Constant de-interleave permutation (identical for both branches):
    # input lane 2h -> output col h, input lane 2h+1 -> output col H+h.
    eye_h = jnp.eye(H, dtype=jnp.bfloat16)
    zero_hh = jnp.zeros((H, H), jnp.bfloat16)
    perm = jnp.stack(
        [jnp.concatenate([eye_h, zero_hh], axis=1),
         jnp.concatenate([zero_hh, eye_h], axis=1)],
        axis=1,
    ).reshape(W, W)
    # TODO(synk): past the MXU/DMA crossover (W ~> 320 on v5e / ~400 on v7x / ~900 on v6e) the
    # O(W^2) permutation matmul stops hiding under the O(W) DMA; switch to an XLU de-interleave
    # (roll/select network) or a perm tiled over output halves, and stop double-buffering it.

    b_s = jnp.asarray(b, jnp.float32).reshape(1)

    tb = _pick_batch_tile(B, W, block_rows)
    grid = (pl.cdiv(B, tb),)

    kernel = functools.partial(_coupling_kernel, hsize=H,
                               shift_first=shift_first, split_store=split_store)
    u_width = u_in.shape[1]

    return pl.pallas_call(
        kernel,
        out_shape=jax.ShapeDtypeStruct((B, W), jnp.float32),
        grid=grid,
        in_specs=[
            pl.BlockSpec((tb, W), lambda i: (i, 0)),              # z tile (pipelined over batch)
            pl.BlockSpec((1, W), lambda i: (0, 0)),               # w_row   (fetched once)
            pl.BlockSpec((1, u_width), lambda i: (0, 0)),         # u       (fetched once)
            pl.BlockSpec((W, W), lambda i: (0, 0)),               # de-interleave permutation
            pl.BlockSpec(memory_space=pltpu.MemorySpace.SMEM),    # b scalar
        ],
        out_specs=pl.BlockSpec((tb, W), lambda i: (i, 0)),
        compiler_params=pltpu.CompilerParams(
            dimension_semantics=("parallel",),   # shard batch tiles across v7x's two TCs
        ),
    )(z, w_row, u_in, perm, b_s)


def coupling_reference(z, w, b, u, r):
    """Pure-JAX reference mirroring the PyTorch forward exactly."""
    B, W = z.shape
    H = W // 2
    x = z.reshape(B, H, 2)
    if float(r) >= 0.5:
        on, off = x[..., 0], x[..., 1]
    else:
        off, on = x[..., 0], x[..., 1]
    prod = jnp.matmul(off, w.T, precision=jax.lax.Precision.HIGHEST) + b   # (B, 1)
    shift = u * jnp.tanh(prod)                                             # (B, H)
    on = on + shift
    if float(r) >= 0.5:
        fx = jnp.stack((on, off), axis=1)
    else:
        fx = jnp.stack((off, on), axis=1)
    return fx.reshape(B, W)


if __name__ == "__main__":
    # Small, lane-aligned demo shapes: B=32 rows, z_size=W=256 -> H=128.
    B, W = 32, 256
    H = W // 2

    key = jax.random.PRNGKey(0)
    kz, kw, kb, ku = jax.random.split(key, 4)

    z = jax.random.normal(kz, (B, W), dtype=jnp.float32)
    w = 0.1 * jax.random.normal(kw, (1, H), dtype=jnp.float32)
    b = 0.1 * jax.random.normal(kb, (1,), dtype=jnp.float32)
    u = 0.1 * jax.random.normal(ku, (1, H), dtype=jnp.float32)

    for r in (0.23, 0.87):   # cover both branches of the coupling mask
        # block_rows=8 -> 4-step batch grid: exercises the pipelined / parallel-grid path.
        fx = jax.block_until_ready(coupling_forward(z, w, b, u, r, block_rows=8))
        ref = coupling_reference(z, w, b, u, r)
        assert fx.shape == (B, W) and fx.dtype == jnp.float32
        assert jnp.allclose(fx, ref, atol=1e-5, rtol=1e-5), f"mismatch vs reference (r={r})"

    # Auto tile selection path (single grid step at this small B).
    fx = jax.block_until_ready(coupling_forward(z, w, b, u, 0.87))
    assert jnp.allclose(fx, coupling_reference(z, w, b, u, 0.87), atol=1e-5, rtol=1e-5)

    print("KERNEL_OK")
</pallas_src>

<mosaic_0001>
module attributes {stable_mosaic.version = 11 : i64} {
  func.func @_coupling_kernel(%arg0: i32, %arg1: memref<8x256xf32, #tpu.memory_space<vmem>>, %arg2: memref<1x256xf32, #tpu.memory_space<vmem>>, %arg3: memref<1x128xf32, #tpu.memory_space<vmem>>, %arg4: memref<256x256xbf16, #tpu.memory_space<vmem>>, %arg5: memref<1xf32, #tpu.memory_space<smem>>, %arg6: memref<8x256xf32, #tpu.memory_space<vmem>>) attributes {dimension_semantics = [#tpu.dimension_semantics<parallel>], iteration_bounds = array<i64: 4>, scalar_prefetch = 0 : i64, scratch_operands = 0 : i64, tpu.core_type = #tpu.core_type<tc>, window_params = [{transform_indices = @transform_0, window_bounds = array<i64: 8, 256>}, {pipeline_mode = #tpu.pipeline_mode<synchronous>, transform_indices = @transform_1, window_bounds = array<i64: 1, 256>}, {pipeline_mode = #tpu.pipeline_mode<synchronous>, transform_indices = @transform_2, window_bounds = array<i64: 1, 128>}, {pipeline_mode = #tpu.pipeline_mode<synchronous>, transform_indices = @transform_3, window_bounds = array<i64: 256, 256>}, {transform_indices = @transform_4, window_bounds = array<i64: 1>}, {transform_indices = @transform_5, window_bounds = array<i64: 8, 256>}]} {
    %c0 = arith.constant 0 : index
    %c0_0 = arith.constant 0 : index
    %0 = vector.load %arg1[%c0, %c0_0] : memref<8x256xf32, #tpu.memory_space<vmem>>, vector<8x256xf32>
    %c0_1 = arith.constant 0 : index
    %c0_2 = arith.constant 0 : index
    %1 = vector.load %arg2[%c0_1, %c0_2] : memref<1x256xf32, #tpu.memory_space<vmem>>, vector<1x256xf32>
    %2 = vector.broadcast %1 : vector<1x256xf32> to vector<8x256xf32>
    %3 = arith.mulf %0, %2 : vector<8x256xf32>
    %cst = arith.constant dense<0.000000e+00> : vector<8xf32>
    %4 = vector.multi_reduction <add>, %3, %cst [1] : vector<8x256xf32> to vector<8xf32>
    %5 = vector.shape_cast %4 : vector<8xf32> to vector<8x1xf32>
    %c0_3 = arith.constant 0 : index
    %6 = memref.load %arg5[%c0_3] : memref<1xf32, #tpu.memory_space<smem>>
    %7 = vector.broadcast %6 : f32 to vector<8x1xf32>
    %8 = arith.addf %5, %7 : vector<8x1xf32>
    %9 = math.tanh %8 : vector<8x1xf32>
    %c0_4 = arith.constant 0 : index
    %c0_5 = arith.constant 0 : index
    %10 = vector.load %arg4[%c0_4, %c0_5] : memref<256x256xbf16, #tpu.memory_space<vmem>>, vector<256x256xbf16>
    %11 = tpu.bitcast %0 : vector<8x256xf32> -> vector<8x256xi32>
    %c-65536_i32 = arith.constant -65536 : i32
    %12 = vector.broadcast %c-65536_i32 : i32 to vector<8x256xi32>
    %13 = arith.andi %11, %12 : vector<8x256xi32>
    %14 = tpu.bitcast %13 : vector<8x256xi32> -> vector<8x256xf32>
    %15 = arith.subf %0, %14 : vector<8x256xf32>
    %16 = tpu.bitcast %15 : vector<8x256xf32> -> vector<8x256xi32>
    %c-65536_i32_6 = arith.constant -65536 : i32
    %17 = vector.broadcast %c-65536_i32_6 : i32 to vector<8x256xi32>
    %18 = arith.andi %16, %17 : vector<8x256xi32>
    %19 = tpu.bitcast %18 : vector<8x256xi32> -> vector<8x256xf32>
    %20 = arith.subf %15, %19 : vector<8x256xf32>
    %21 = arith.truncf %14 : vector<8x256xf32> to vector<8x256xbf16>
    %22 = arith.truncf %19 : vector<8x256xf32> to vector<8x256xbf16>
    %23 = arith.truncf %20 : vector<8x256xf32> to vector<8x256xbf16>
    %cst_7 = arith.constant dense<0.000000e+00> : vector<8x256xf32>
    %24 = tpu.matmul %21, %10, %cst_7 {dimension_numbers = #tpu.dot_dimension_numbers<[1], [0], [0], [1], [0, 0, 1, 1], [], []>} : vector<8x256xbf16>, vector<256x256xbf16>, vector<8x256xf32> -> vector<8x256xf32>
    %cst_8 = arith.constant dense<0.000000e+00> : vector<8x256xf32>
    %25 = tpu.matmul %22, %10, %cst_8 {dimension_numbers = #tpu.dot_dimension_numbers<[1], [0], [0], [1], [0, 0, 1, 1], [], []>} : vector<8x256xbf16>, vector<256x256xbf16>, vector<8x256xf32> -> vector<8x256xf32>
    %26 = arith.addf %24, %25 : vector<8x256xf32>
    %cst_9 = arith.constant dense<0.000000e+00> : vector<8x256xf32>
    %27 = tpu.matmul %23, %10, %cst_9 {dimension_numbers = #tpu.dot_dimension_numbers<[1], [0], [0], [1], [0, 0, 1, 1], [], []>} : vector<8x256xbf16>, vector<256x256xbf16>, vector<8x256xf32> -> vector<8x256xf32>
    %28 = arith.addf %26, %27 : vector<8x256xf32>
    %c0_10 = arith.constant 0 : index
    %c0_11 = arith.constant 0 : index
    %29 = vector.load %arg3[%c0_10, %c0_11] : memref<1x128xf32, #tpu.memory_space<vmem>>, vector<1x128xf32>
    %30 = vector.broadcast %29 : vector<1x128xf32> to vector<8x128xf32>
    %31 = vector.broadcast %9 : vector<8x1xf32> to vector<8x128xf32>
    %32 = arith.mulf %30, %31 : vector<8x128xf32>
    %33 = vector.extract_strided_slice %28 {offsets = [0, 0], sizes = [8, 128], strides = [1, 1]} : vector<8x256xf32> to vector<8x128xf32>
    %c0_12 = arith.constant 0 : index
    %c0_13 = arith.constant 0 : index
    %34 = vector.load %arg6[%c0_12, %c0_13] : memref<8x256xf32, #tpu.memory_space<vmem>>, vector<8x128xf32>
    tpu.vector_store %arg6[%c0_12, %c0_13], %33 {strides = array<i32>} : memref<8x256xf32, #tpu.memory_space<vmem>>, vector<8x128xf32>,
    %35 = vector.extract_strided_slice %28 {offsets = [0, 128], sizes = [8, 128], strides = [1, 1]} : vector<8x256xf32> to vector<8x128xf32>
    %36 = arith.addf %35, %32 : vector<8x128xf32>
    %c0_14 = arith.constant 0 : index
    %c128 = arith.constant 128 : index
    %37 = vector.load %arg6[%c0_14, %c128] : memref<8x256xf32, #tpu.memory_space<vmem>>, vector<8x128xf32>
    tpu.vector_store %arg6[%c0_14, %c128], %36 {strides = array<i32>} : memref<8x256xf32, #tpu.memory_space<vmem>>, vector<8x128xf32>,
    return
  }
  func.func @transform_0(%arg0: i32) -> (i32, i32) {
    %c0_i32 = arith.constant 0 : i32
    %c0_i32_0 = arith.constant 0 : i32
    return %arg0, %c0_i32 : i32, i32
  }
  func.func @transform_1(%arg0: i32) -> (i32, i32) {
    %c0_i32 = arith.constant 0 : i32
    %c0_i32_0 = arith.constant 0 : i32
    %c0_i32_1 = arith.constant 0 : i32
    return %c0_i32, %c0_i32_0 : i32, i32
  }
  func.func @transform_2(%arg0: i32) -> (i32, i32) {
    %c0_i32 = arith.constant 0 : i32
    %c0_i32_0 = arith.constant 0 : i32
    %c0_i32_1 = arith.constant 0 : i32
    return %c0_i32, %c0_i32_0 : i32, i32
  }
  func.func @transform_3(%arg0: i32) -> (i32, i32) {
    %c0_i32 = arith.constant 0 : i32
    %c0_i32_0 = arith.constant 0 : i32
    %c0_i32_1 = arith.constant 0 : i32
    return %c0_i32, %c0_i32_0 : i32, i32
  }
  func.func @transform_4(%arg0: i32) -> i32 {
    %c0_i32 = arith.constant 0 : i32
    %c0_i32_0 = arith.constant 0 : i32
    return %c0_i32 : i32
  }
  func.func @transform_5(%arg0: i32) -> (i32, i32) {
    %c0_i32 = arith.constant 0 : i32
    %c0_i32_0 = arith.constant 0 : i32
    return %arg0, %c0_i32 : i32, i32
  }
}

</mosaic_0001>

<llo_original>
// kernel: tpu_custom_call.1
$region0: #{tpu_custom_call.1}
  #allocation0 [shape = 'u32[]', space=smem, size = 0x4, offset = 0x4, fixed_abs, tag = 'smem constant byte address 0x4 - core index']
  #allocation1 [shape = 'u32[72,128]{1,0:T(1,128)}', space=vmem, size = 0x9000, scoped, tag = 'internal scratch']
  #allocation2 [shape = 'f32[1]{0:T(128)S(6)}', space=smem, size = 0x200, scoped, tag = 'scoped memory for tpu_custom_call.1']
  %s0 = inlined_call_operand.hbm [shape: f32[32,256], index: 0, kind: input, shape index: {}]
  %s1 = inlined_call_operand.vmem [shape: f32[1,256], index: 1, kind: input, shape index: {}]
  %s2 = inlined_call_operand.vmem [shape: f32[1,128], index: 2, kind: input, shape index: {}]
  %s3 = inlined_call_operand.hbm [shape: bf16[256,256], index: 3, kind: input, shape index: {}]
  %s4 = inlined_call_operand.<no memory space> [shape: f32[1], index: 4, kind: input, shape index: {}]
  %s5 = inlined_call_operand.hbm [shape: f32[32,256], index: 5, kind: output, shape index: {}]
  %s6 = sld [smem:[#allocation0]]
  $region61: #{tpu_custom_call.1} parent=0
    _
  %s8 = ssub.s32 1, %s6
  %s9 = scalar_select 0, %s8, %s6
  %10 = sst [smem:[#allocation2]] %s4
  $region1: #{tpu_custom_call.1} parent=0
    #allocation3 [shape = 'u8[16384]{0}', space=vmem, size = 0x4000, scoped, tag = 'input window, operand 0']
    #allocation4 [shape = 's32[2]{0}', space=sflag, size = 0x8, scoped, tag = 'scoped memory for tpu_custom_call.1']
    #allocation5 [shape = 's32[2]{0}', space=sflag, size = 0x8, scoped, tag = 'scoped memory for tpu_custom_call.1']
    #allocation6 [shape = 'u8[131072]{0}', space=vmem, size = 0x20000, scoped, tag = 'input window, operand 3, single buffered']
    #allocation7 [shape = 's32[1]{0}', space=sflag, size = 0x4, scoped, tag = 'scoped memory for tpu_custom_call.1']
    #allocation8 [shape = 'u8[16384]{0}', space=vmem, size = 0x4000, scoped, tag = 'output window, operand 0']
    %11 = vsyncpa [#allocation4], 0
    %s12 = scalar_lea.sflag [#allocation4], 1
    %13 = vsyncpa %s12, 0
    %14 = vsyncpa [#allocation7], 0
    %15 = vsyncpa [#allocation5], 0
    %s16 = scalar_lea.sflag [#allocation5], 1
    %17 = vsyncpa %s16, 0
    loop: start=0, step=1, limit=6
    $region2: #{tpu_custom_call.1} parent=1 // loop_pre_header
      _
    $region3: #{tpu_custom_call.1} parent=1 // loop_header
      %s19 = sphi 0, %s23
      %p20 = scmp.ge.s32.totalorder %s19, 6
      %s29 = sphi 0, %s31
      %s32 = sphi 0, %s29
      %s33 = sphi 0, %s32
      %s49 = sphi 0, %s33
      %s53 = sphi 0, %s53
      %s55 = sphi 0, %s53
      %s56 = sphi 0, %s55
      %s70 = sphi 0, %s56
      %s74 = sphi 0, %s74
      %s76 = sphi 0, %s74
      %s77 = sphi 0, %s76
      %s91 = sphi 0, %s77
      %s95 = sphi 0, %s95
      %s97 = sphi 0, %s95
      %s98 = sphi 0, %s97
      %s112 = sphi 0, %s98
      %s116 = sphi 0, %s116
      %s118 = sphi 0, %s116
      %s119 = sphi 0, %s118
      %s133 = sphi 0, %s119
      %s139 = sphi 0, %s141
      %s142 = sphi 0, %s139
      %s143 = sphi 0, %s142
      %s159 = sphi 0, %s143
    $region4: #{tpu_custom_call.1} parent=1 // loop_header_branch
      %22 = sbr.rel (%p20) target = $region8
    $region5: #{tpu_custom_call.1} parent=1 // loop_body
      %s24 = ssub.s32 %s19, 1
      %s25 = ssub.s32 %s19, 2
      %s26 = sadd.s32 %s19, 1
      %s27 = ssub.s32 %s19, %s26
      %p28 = scmp.eq.s32.totalorder %s27, 0
      %s30 = sadd.s32 %s29, 1
      %s31 = scalar_select %p28, %s29, %s30
      %p34 = pneg %p28
      %p35 = scmp.eq.s32.totalorder %s19, 3
      %p36 = por %p34, %p35
      %p37 = scmp.ne.s32.totalorder %s29, %s32
      %p38 = scmp.eq.s32.totalorder %s19, 0
      %p39 = por %p37, %p38
      %p40 = scmp.ne.s32.totalorder %s29, %s32
      %p41 = scmp.eq.s32.totalorder %s24, 3
      %p42 = por %p40, %p41
      %p43 = scmp.ne.s32.totalorder %s32, %s33
      %p44 = scmp.eq.s32.totalorder %s24, 0
      %p45 = por %p43, %p44
      %p46 = scmp.ne.s32.totalorder %s32, %s33
      %p47 = scmp.eq.s32.totalorder %s25, 3
      %p48 = por %p46, %p47
      %p50 = scmp.ne.s32.totalorder %s33, %s49
      %p51 = scmp.eq.s32.totalorder %s25, 0
      %p52 = por %p50, %p51
      %s54 = sadd.s32 %s53, 1
      %p57 = scmp.eq.s32.totalorder %s19, 3
      %p58 = scmp.ne.s32.totalorder %s53, %s55
      %p59 = scmp.eq.s32.totalorder %s19, 0
      %p60 = por %p58, %p59
      %p61 = scmp.ne.s32.totalorder %s53, %s55
      %p62 = scmp.eq.s32.totalorder %s24, 3
      %p63 = por %p61, %p62
      %p64 = scmp.ne.s32.totalorder %s55, %s56
      %p65 = scmp.eq.s32.totalorder %s24, 0
      %p66 = por %p64, %p65
      %p67 = scmp.ne.s32.totalorder %s55, %s56
      %p68 = scmp.eq.s32.totalorder %s25, 3
      %p69 = por %p67, %p68
      %p71 = scmp.ne.s32.totalorder %s56, %s70
      %p72 = scmp.eq.s32.totalorder %s25, 0
      %p73 = por %p71, %p72
      %s75 = sadd.s32 %s74, 1
      %p78 = scmp.eq.s32.totalorder %s19, 3
      %p79 = scmp.ne.s32.totalorder %s74, %s76
      %p80 = scmp.eq.s32.totalorder %s19, 0
      %p81 = por %p79, %p80
      %p82 = scmp.ne.s32.totalorder %s74, %s76
      %p83 = scmp.eq.s32.totalorder %s24, 3
      %p84 = por %p82, %p83
      %p85 = scmp.ne.s32.totalorder %s76, %s77
      %p86 = scmp.eq.s32.totalorder %s24, 0
      %p87 = por %p85, %p86
      %p88 = scmp.ne.s32.totalorder %s76, %s77
      %p89 = scmp.eq.s32.totalorder %s25, 3
      %p90 = por %p88, %p89
      %p92 = scmp.ne.s32.totalorder %s77, %s91
      %p93 = scmp.eq.s32.totalorder %s25, 0
      %p94 = por %p92, %p93
      %s96 = sadd.s32 %s95, 1
      %p99 = scmp.eq.s32.totalorder %s19, 3
      %p100 = scmp.ne.s32.totalorder %s95, %s97
      %p101 = scmp.eq.s32.totalorder %s19, 0
      %p102 = por %p100, %p101
      %p103 = scmp.ne.s32.totalorder %s95, %s97
      %p104 = scmp.eq.s32.totalorder %s24, 3
      %p105 = por %p103, %p104
      %p106 = scmp.ne.s32.totalorder %s97, %s98
      %p107 = scmp.eq.s32.totalorder %s24, 0
      %p108 = por %p106, %p107
      %p109 = scmp.ne.s32.totalorder %s97, %s98
      %p110 = scmp.eq.s32.totalorder %s25, 3
      %p111 = por %p109, %p110
      %p113 = scmp.ne.s32.totalorder %s98, %s112
      %p114 = scmp.eq.s32.totalorder %s25, 0
      %p115 = por %p113, %p114
      %s117 = sadd.s32 %s116, 1
      %p120 = scmp.eq.s32.totalorder %s19, 3
      %p121 = scmp.ne.s32.totalorder %s116, %s118
      %p122 = scmp.eq.s32.totalorder %s19, 0
      %p123 = por %p121, %p122
      %p124 = scmp.ne.s32.totalorder %s116, %s118
      %p125 = scmp.eq.s32.totalorder %s24, 3
      %p126 = por %p124, %p125
      %p127 = scmp.ne.s32.totalorder %s118, %s119
      %p128 = scmp.eq.s32.totalorder %s24, 0
      %p129 = por %p127, %p128
      %p130 = scmp.ne.s32.totalorder %s118, %s119
      %p131 = scmp.eq.s32.totalorder %s25, 3
      %p132 = por %p130, %p131
      %p134 = scmp.ne.s32.totalorder %s119, %s133
      %p135 = scmp.eq.s32.totalorder %s25, 0
      %p136 = por %p134, %p135
      %s137 = ssub.s32 %s19, %s26
      %p138 = scmp.eq.s32.totalorder %s137, 0
      %s140 = sadd.s32 %s139, 1
      %s141 = scalar_select %p138, %s139, %s140
      %p144 = pneg %p138
      %p145 = scmp.eq.s32.totalorder %s19, 3
      %p146 = por %p144, %p145
      %p147 = scmp.ne.s32.totalorder %s139, %s142
      %p148 = scmp.eq.s32.totalorder %s19, 0
      %p149 = por %p147, %p148
      %p150 = scmp.ne.s32.totalorder %s139, %s142
      %p151 = scmp.eq.s32.totalorder %s24, 3
      %p152 = por %p150, %p151
      %p153 = scmp.ne.s32.totalorder %s142, %s143
      %p154 = scmp.eq.s32.totalorder %s24, 0
      %p155 = por %p153, %p154
      %p156 = scmp.ne.s32.totalorder %s142, %s143
      %p157 = scmp.eq.s32.totalorder %s25, 3
      %p158 = por %p156, %p157
      %p160 = scmp.ne.s32.totalorder %s143, %s159
      %p161 = scmp.eq.s32.totalorder %s25, 0
      %p162 = por %p160, %p161
      %p163 = scmp.le.s32.totalorder 1, %s19
      %p164 = scmp.lt.s32.totalorder %s19, 5
      %p165 = pnand %p163, %p164
      %p166 = pneg %p165
      // Predicated region
      $region9: #{tpu_custom_call.1} parent=5 // pred_check
        _
      $region10: #{tpu_custom_call.1} parent=5 // pred_check_branch
        %168 = sbr.rel (%p165) target = $region12
      $region11: #{tpu_custom_call.1} parent=5 // pred_region
        %s169 = ssub.s32 %s19, 1
        // Predicated region
        $region13: #{tpu_custom_call.1} parent=11 // pred_check
          %p170 = pneg %p66
        $region14: #{tpu_custom_call.1} parent=11 // pred_check_branch
          %172 = sbr.rel (%p170) target = $region16
        $region15: #{tpu_custom_call.1} parent=11 // pred_region
          _
        $region16: #{tpu_custom_call.1} parent=11 // pred_fallthru
          _
        // Predicated region
        $region17: #{tpu_custom_call.1} parent=11 // pred_check
          %p173 = pneg %p87
        $region18: #{tpu_custom_call.1} parent=11 // pred_check_branch
          %175 = sbr.rel (%p173) target = $region20
        $region19: #{tpu_custom_call.1} parent=11 // pred_region
          _
        $region20: #{tpu_custom_call.1} parent=11 // pred_fallthru
          _
        // Predicated region
        $region21: #{tpu_custom_call.1} parent=11 // pred_check
          %p176 = pneg %p108
        $region22: #{tpu_custom_call.1} parent=11 // pred_check_branch
          %178 = sbr.rel (%p176) target = $region24
        $region23: #{tpu_custom_call.1} parent=11 // pred_region
          %180 = vsyncadd [#allocation7], 0
          %s181 = sshll.u32 %s3, 4
          %s182 = int_to_ptr.hbm [resolvable:$true] %s181
          %s183 = sshll.u32 [#allocation6], 4
          %s184 = int_to_ptr.vmem [resolvable:$true] %s183
          %189 = dma.hbm_to_vmem [thread:$0]  %s182, 4096, %s184, [#allocation7], 128, 128, 8
        $region24: #{tpu_custom_call.1} parent=11 // pred_fallthru
          _
        // Predicated region
        $region25: #{tpu_custom_call.1} parent=11 // pred_check
          %p190 = pneg %p129
        $region26: #{tpu_custom_call.1} parent=11 // pred_check_branch
          %192 = sbr.rel (%p190) target = $region28
        $region27: #{tpu_custom_call.1} parent=11 // pred_region
          _
        $region28: #{tpu_custom_call.1} parent=11 // pred_fallthru
          _
      $region12: #{tpu_custom_call.1} parent=5 // pred_fallthru
        _
      %p193 = scmp.lt.s32.totalorder %s19, 4
      // Predicated region
      $region29: #{tpu_custom_call.1} parent=5 // pred_check
        %p194 = pneg %p193
      $region30: #{tpu_custom_call.1} parent=5 // pred_check_branch
        %196 = sbr.rel (%p194) target = $region32
      $region31: #{tpu_custom_call.1} parent=5 // pred_region
        // Predicated region
        $region33: #{tpu_custom_call.1} parent=31 // pred_check
          %p197 = pneg %p39
        $region34: #{tpu_custom_call.1} parent=31 // pred_check_branch
          %199 = sbr.rel (%p197) target = $region36
        $region35: #{tpu_custom_call.1} parent=31 // pred_region
          %s200 = sand.u32 %s29, 1
          %s201 = scalar_lea.sflag [#allocation4], %s200
          %s202 = sand.u32 %s29, 1
          %s203 = smul.addr %s202, 16
          %s204 = scalar_lea.vmem [#allocation3], %s203
          %206 = vsyncadd %s201, 0
          %s207 = smul.addr %s19, 2
          %s208 = smul.addr %s207, 8
          %s209 = scalar_lea.hbm %s0, %s208
          %s211 = sshll.u32 %s209, 4
          %s212 = int_to_ptr.hbm [resolvable:$true] %s211
          %s213 = sshll.u32 %s204, 4
          %s214 = int_to_ptr.vmem [resolvable:$true] %s213
          %216 = dma.hbm_to_vmem [thread:$0]  %s212, 256, %s214, %s201
        $region36: #{tpu_custom_call.1} parent=31 // pred_fallthru
          _
      $region32: #{tpu_custom_call.1} parent=5 // pred_fallthru
        _
      %p217 = scmp.le.s32.totalorder 1, %s19
      %p218 = scmp.lt.s32.totalorder %s19, 5
      %p219 = pnand %p217, %p218
      %p220 = pneg %p219
      // Predicated region
      $region37: #{tpu_custom_call.1} parent=5 // pred_check
        _
      $region38: #{tpu_custom_call.1} parent=5 // pred_check_branch
        %222 = sbr.rel (%p219) target = $region40
      $region39: #{tpu_custom_call.1} parent=5 // pred_region
        %s223 = ssub.s32 %s19, 1
        %s224 = sand.u32 %s32, 1
        %s225 = scalar_lea.sflag [#allocation4], %s224
        %s226 = sand.u32 %s32, 1
        %s227 = smul.addr %s226, 16
        %s228 = scalar_lea.vmem [#allocation3], %s227
        // Predicated region
        $region41: #{tpu_custom_call.1} parent=39 // pred_check
          %p229 = pneg %p45
        $region42: #{tpu_custom_call.1} parent=39 // pred_check_branch
          %231 = sbr.rel (%p229) target = $region44
        $region43: #{tpu_custom_call.1} parent=39 // pred_region
          %233 = dma.done %s225, 256
        $region44: #{tpu_custom_call.1} parent=39 // pred_fallthru
          _
        // Predicated region
        $region45: #{tpu_custom_call.1} parent=39 // pred_check
          %p234 = pneg %p108
        $region46: #{tpu_custom_call.1} parent=39 // pred_check_branch
          %236 = sbr.rel (%p234) target = $region48
        $region47: #{tpu_custom_call.1} parent=39 // pred_region
          %238 = dma.done [#allocation7], 4096
        $region48: #{tpu_custom_call.1} parent=39 // pred_fallthru
          _
        %s239 = sand.u32 %s32, 1
        %s240 = scalar_lea.sflag [#allocation4], %s239
        %s241 = sand.u32 %s32, 1
        %s242 = smul.addr %s241, 16
        %s243 = scalar_lea.vmem [#allocation3], %s242
        %p244 = pneg %p45
        %p245 = pneg %p42
        %p246 = pneg %p66
        %p247 = pneg %p63
        %p248 = pneg %p87
        %p249 = pneg %p84
        %p250 = pneg %p108
        %p251 = pneg %p105
        %p252 = pneg %p129
        %p253 = pneg %p126
        %p254 = pneg %p155
        %p255 = pneg %p152
        %s256 = sand.u32 %s142, 1
        %s257 = scalar_lea.sflag [#allocation5], %s256
        %s258 = sand.u32 %s142, 1
        %s259 = smul.addr %s258, 16
        %s260 = scalar_lea.vmem [#allocation8], %s259
        %v261 = vld [vmem:[%s228] sm:$0xff]
        %v262 = vld [vmem:[%s228 + $0x8] sm:$0xff]
        %v263 = vld [vmem:[%s1] sm:$0x3]
        %v265 = vperm.slane %v263, 0
        %v266 = vperm.slane %v263, 1
        %v269 = vmul.f32 %v261, %v265
        %v270 = vmul.f32 %v262, %v266
        %v271 = vadd.f32 %v269, %v270
        %272 = vadd.xlane.f32.xlu0 %v271
        %v273 = vpop.xlane.xlu0 %272
        %s274 = sld [smem:[#allocation2]]
        %v275 = vstv %s274
        %v276 = vadd.f32 %v273, %v275
        %v277 = vtanh.pop %v276
        %v278 = vld [vmem:[#allocation6] sm:$0xff]
        %v279 = vld [vmem:[#allocation6 + $0x8] sm:$0xff]
        %v280 = vld [vmem:[#allocation6 + $0x10] sm:$0xff]
        %v281 = vld [vmem:[#allocation6 + $0x18] sm:$0xff]
        %v282 = vld [vmem:[#allocation6 + $0x20] sm:$0xff]
        %v283 = vld [vmem:[#allocation6 + $0x28] sm:$0xff]
        %v284 = vld [vmem:[#allocation6 + $0x30] sm:$0xff]
        %v285 = vld [vmem:[#allocation6 + $0x38] sm:$0xff]
        %v286 = vld [vmem:[#allocation6 + $0x40] sm:$0xff]
        %v287 = vld [vmem:[#allocation6 + $0x48] sm:$0xff]
        %v288 = vld [vmem:[#allocation6 + $0x50] sm:$0xff]
        %v289 = vld [vmem:[#allocation6 + $0x58] sm:$0xff]
        %v290 = vld [vmem:[#allocation6 + $0x60] sm:$0xff]
        %v291 = vld [vmem:[#allocation6 + $0x68] sm:$0xff]
        %v292 = vld [vmem:[#allocation6 + $0x70] sm:$0xff]
        %v293 = vld [vmem:[#allocation6 + $0x78] sm:$0xff]
        %v294 = vld [vmem:[#allocation6 + $0x80] sm:$0xff]
        %v295 = vld [vmem:[#allocation6 + $0x88] sm:$0xff]
        %v296 = vld [vmem:[#allocation6 + $0x90] sm:$0xff]
        %v297 = vld [vmem:[#allocation6 + $0x98] sm:$0xff]
        %v298 = vld [vmem:[#allocation6 + $0xa0] sm:$0xff]
        %v299 = vld [vmem:[#allocation6 + $0xa8] sm:$0xff]
        %v300 = vld [vmem:[#allocation6 + $0xb0] sm:$0xff]
        %v301 = vld [vmem:[#allocation6 + $0xb8] sm:$0xff]
        %v302 = vld [vmem:[#allocation6 + $0xc0] sm:$0xff]
        %v303 = vld [vmem:[#allocation6 + $0xc8] sm:$0xff]
        %v304 = vld [vmem:[#allocation6 + $0xd0] sm:$0xff]
        %v305 = vld [vmem:[#allocation6 + $0xd8] sm:$0xff]
        %v306 = vld [vmem:[#allocation6 + $0xe0] sm:$0xff]
        %v307 = vld [vmem:[#allocation6 + $0xe8] sm:$0xff]
        %v308 = vld [vmem:[#allocation6 + $0xf0] sm:$0xff]
        %v309 = vld [vmem:[#allocation6 + $0xf8] sm:$0xff]
        %v312 = vand.u32 %v261, 4294901760
        %v313 = vand.u32 %v262, 4294901760
        %v316 = vsub.f32 %v261, %v312
        %v317 = vsub.f32 %v262, %v313
        %v320 = vand.u32 %v316, 4294901760
        %v321 = vand.u32 %v317, 4294901760
        %v324 = vsub.f32 %v316, %v320
        %v325 = vsub.f32 %v317, %v321
        %v326 = vpack.c.bf16 %v312, %v312
        %v327 = vpack.c.bf16 %v313, %v313
        %v328 = vpack.c.bf16 %v320, %v320
        %v329 = vpack.c.bf16 %v321, %v321
        %v330 = vpack.c.bf16 %v324, %v324
        %v331 = vpack.c.bf16 %v325, %v325
        %v364 = vunpack.c.l.b16 %v278
        %v365 = vunpack.c.h.b16 %v278
        %v366 = vunpack.c.l.b16 %v279
        %v367 = vunpack.c.h.b16 %v279
        %v368 = vunpack.c.l.b16 %v280
        %v369 = vunpack.c.h.b16 %v280
        %v370 = vunpack.c.l.b16 %v281
        %v371 = vunpack.c.h.b16 %v281
        %v372 = vunpack.c.l.b16 %v282
        %v373 = vunpack.c.h.b16 %v282
        %v374 = vunpack.c.l.b16 %v283
        %v375 = vunpack.c.h.b16 %v283
        %v376 = vunpack.c.l.b16 %v284
        %v377 = vunpack.c.h.b16 %v284
        %v378 = vunpack.c.l.b16 %v285
        %v379 = vunpack.c.h.b16 %v285
        %v380 = vunpack.c.l.b16 %v286
        %v381 = vunpack.c.h.b16 %v286
        %v382 = vunpack.c.l.b16 %v287
        %v383 = vunpack.c.h.b16 %v287
        %v384 = vunpack.c.l.b16 %v288
        %v385 = vunpack.c.h.b16 %v288
        %v386 = vunpack.c.l.b16 %v289
        %v387 = vunpack.c.h.b16 %v289
        %v388 = vunpack.c.l.b16 %v290
        %v389 = vunpack.c.h.b16 %v290
        %v390 = vunpack.c.l.b16 %v291
        %v391 = vunpack.c.h.b16 %v291
        %v392 = vunpack.c.l.b16 %v292
        %v393 = vunpack.c.h.b16 %v292
        %v394 = vunpack.c.l.b16 %v293
        %v395 = vunpack.c.h.b16 %v293
        %v396 = vunpack.c.l.b16 %v294
        %v397 = vunpack.c.h.b16 %v294
        %v398 = vunpack.c.l.b16 %v295
        %v399 = vunpack.c.h.b16 %v295
        %v400 = vunpack.c.l.b16 %v296
        %v401 = vunpack.c.h.b16 %v296
        %v402 = vunpack.c.l.b16 %v297
        %v403 = vunpack.c.h.b16 %v297
        %v404 = vunpack.c.l.b16 %v298
        %v405 = vunpack.c.h.b16 %v298
        %v406 = vunpack.c.l.b16 %v299
        %v407 = vunpack.c.h.b16 %v299
        %v408 = vunpack.c.l.b16 %v300
        %v409 = vunpack.c.h.b16 %v300
        %v410 = vunpack.c.l.b16 %v301
        %v411 = vunpack.c.h.b16 %v301
        %v412 = vunpack.c.l.b16 %v302
        %v413 = vunpack.c.h.b16 %v302
        %v414 = vunpack.c.l.b16 %v303
        %v415 = vunpack.c.h.b16 %v303
        %v416 = vunpack.c.l.b16 %v304
        %v417 = vunpack.c.h.b16 %v304
        %v418 = vunpack.c.l.b16 %v305
        %v419 = vunpack.c.h.b16 %v305
        %v420 = vunpack.c.l.b16 %v306
        %v421 = vunpack.c.h.b16 %v306
        %v422 = vunpack.c.l.b16 %v307
        %v423 = vunpack.c.h.b16 %v307
        %v424 = vunpack.c.l.b16 %v308
        %v425 = vunpack.c.h.b16 %v308
        %v426 = vunpack.c.l.b16 %v309
        %v427 = vunpack.c.h.b16 %v309
        %v428 = vpack.c.b16 %v366, %v364
        %v429 = vpack.c.b16 %v367, %v365
        %v430 = vpack.c.b16 %v370, %v368
        %v431 = vpack.c.b16 %v371, %v369
        %v432 = vpack.c.b16 %v374, %v372
        %v433 = vpack.c.b16 %v375, %v373
        %v434 = vpack.c.b16 %v378, %v376
        %v435 = vpack.c.b16 %v379, %v377
        %v436 = vpack.c.b16 %v382, %v380
        %v437 = vpack.c.b16 %v383, %v381
        %v438 = vpack.c.b16 %v386, %v384
        %v439 = vpack.c.b16 %v387, %v385
        %v440 = vpack.c.b16 %v390, %v388
        %v441 = vpack.c.b16 %v391, %v389
        %v442 = vpack.c.b16 %v394, %v392
        %v443 = vpack.c.b16 %v395, %v393
        %v444 = vpack.c.b16 %v398, %v396
        %v445 = vpack.c.b16 %v399, %v397
        %v446 = vpack.c.b16 %v402, %v400
        %v447 = vpack.c.b16 %v403, %v401
        %v448 = vpack.c.b16 %v406, %v404
        %v449 = vpack.c.b16 %v407, %v405
        %v450 = vpack.c.b16 %v410, %v408
        %v451 = vpack.c.b16 %v411, %v409
        %v452 = vpack.c.b16 %v414, %v412
        %v453 = vpack.c.b16 %v415, %v413
        %v454 = vpack.c.b16 %v418, %v416
        %v455 = vpack.c.b16 %v419, %v417
        %v456 = vpack.c.b16 %v422, %v420
        %v457 = vpack.c.b16 %v423, %v421
        %v458 = vpack.c.b16 %v426, %v424
        %v459 = vpack.c.b16 %v427, %v425
        %492 = vmatpush.bf16.msra.mxu0 %v442
        %493 = vmatpush.bf16.msra.mxu0 %v440
        %494 = vmatpush.bf16.msra.mxu0 %v438
        %495 = vmatpush.bf16.msra.mxu0 %v436
        %496 = vmatpush.bf16.msra.mxu0 %v434
        %497 = vmatpush.bf16.msra.mxu0 %v432
        %498 = vmatpush.bf16.msra.mxu0 %v430
        %499 = vmatpush.bf16.msra.mxu0 %v428
        %500 = vmatmul.bf16.gmra.mxu0 %v328
        %v501 = vpop.f32.mrf.mxu0
        %v502 = vadd.f32 0.0, %v501
        %v503 = vpop.f32.mrf.mxu0
        %504 = vdwg.mxu0
        %505 = vmatpush.bf16.msra.mxu0 %v458
        %506 = vmatpush.bf16.msra.mxu0 %v456
        %507 = vmatpush.bf16.msra.mxu0 %v454
        %508 = vmatpush.bf16.msra.mxu0 %v452
        %509 = vmatpush.bf16.msra.mxu0 %v450
        %510 = vmatpush.bf16.msra.mxu0 %v448
        %511 = vmatpush.bf16.msra.mxu0 %v446
        %512 = vmatpush.bf16.msra.mxu0 %v444
        %513 = vmatmul.bf16.gmra.mxu0 %v329
        %v514 = vpop.f32.mrf.mxu0
        %v515 = vadd.f32 %v502, %v514
        %v516 = vpop.f32.mrf.mxu0
        %517 = vdwg.mxu0
        %518 = vmatpush.bf16.msra.mxu0 %v443
        %519 = vmatpush.bf16.msra.mxu0 %v441
        %520 = vmatpush.bf16.msra.mxu0 %v439
        %521 = vmatpush.bf16.msra.mxu0 %v437
        %522 = vmatpush.bf16.msra.mxu0 %v435
        %523 = vmatpush.bf16.msra.mxu0 %v433
        %524 = vmatpush.bf16.msra.mxu0 %v431
        %525 = vmatpush.bf16.msra.mxu0 %v429
        %526 = vmatmul.bf16.gmra.mxu0 %v328
        %v527 = vpop.f32.mrf.mxu0
        %v528 = vadd.f32 0.0, %v527
        %v529 = vpop.f32.mrf.mxu0
        %530 = vdwg.mxu0
        %531 = vmatpush.bf16.msra.mxu0 %v459
        %532 = vmatpush.bf16.msra.mxu0 %v457
        %533 = vmatpush.bf16.msra.mxu0 %v455
        %534 = vmatpush.bf16.msra.mxu0 %v453
        %535 = vmatpush.bf16.msra.mxu0 %v451
        %536 = vmatpush.bf16.msra.mxu0 %v449
        %537 = vmatpush.bf16.msra.mxu0 %v447
        %538 = vmatpush.bf16.msra.mxu0 %v445
        %539 = vmatmul.bf16.gmra.mxu0 %v329
        %v540 = vpop.f32.mrf.mxu0
        %v541 = vadd.f32 %v528, %v540
        %v542 = vpop.f32.mrf.mxu0
        %543 = vdwg.mxu0
        %544 = vmatpush.bf16.msra.mxu0 %v442
        %545 = vmatpush.bf16.msra.mxu0 %v440
        %546 = vmatpush.bf16.msra.mxu0 %v438
        %547 = vmatpush.bf16.msra.mxu0 %v436
        %548 = vmatpush.bf16.msra.mxu0 %v434
        %549 = vmatpush.bf16.msra.mxu0 %v432
        %550 = vmatpush.bf16.msra.mxu0 %v430
        %551 = vmatpush.bf16.msra.mxu0 %v428
        %552 = vmatmul.bf16.gmra.mxu0 %v326
        %v553 = vpop.f32.mrf.mxu0
        %v554 = vadd.f32 %v515, %v553
        %v555 = vpop.f32.mrf.mxu0
        %556 = vdwg.mxu0
        %557 = vmatpush.bf16.msra.mxu0 %v458
        %558 = vmatpush.bf16.msra.mxu0 %v456
        %559 = vmatpush.bf16.msra.mxu0 %v454
        %560 = vmatpush.bf16.msra.mxu0 %v452
        %561 = vmatpush.bf16.msra.mxu0 %v450
        %562 = vmatpush.bf16.msra.mxu0 %v448
        %563 = vmatpush.bf16.msra.mxu0 %v446
        %564 = vmatpush.bf16.msra.mxu0 %v444
        %565 = vmatmul.bf16.gmra.mxu0 %v327
        %v566 = vpop.f32.mrf.mxu0
        %v567 = vadd.f32 %v554, %v566
        %v568 = vpop.f32.mrf.mxu0
        %569 = vdwg.mxu0
        %570 = vmatpush.bf16.msra.mxu0 %v443
        %571 = vmatpush.bf16.msra.mxu0 %v441
        %572 = vmatpush.bf16.msra.mxu0 %v439
        %573 = vmatpush.bf16.msra.mxu0 %v437
        %574 = vmatpush.bf16.msra.mxu0 %v435
        %575 = vmatpush.bf16.msra.mxu0 %v433
        %576 = vmatpush.bf16.msra.mxu0 %v431
        %577 = vmatpush.bf16.msra.mxu0 %v429
        %578 = vmatmul.bf16.gmra.mxu0 %v326
        %v579 = vpop.f32.mrf.mxu0
        %v580 = vadd.f32 %v541, %v579
        %v581 = vpop.f32.mrf.mxu0
        %582 = vdwg.mxu0
        %583 = vmatpush.bf16.msra.mxu0 %v459
        %584 = vmatpush.bf16.msra.mxu0 %v457
        %585 = vmatpush.bf16.msra.mxu0 %v455
        %586 = vmatpush.bf16.msra.mxu0 %v453
        %587 = vmatpush.bf16.msra.mxu0 %v451
        %588 = vmatpush.bf16.msra.mxu0 %v449
        %589 = vmatpush.bf16.msra.mxu0 %v447
        %590 = vmatpush.bf16.msra.mxu0 %v445
        %591 = vmatmul.bf16.gmra.mxu0 %v327
        %v592 = vpop.f32.mrf.mxu0
        %v593 = vadd.f32 %v580, %v592
        %v594 = vpop.f32.mrf.mxu0
        %595 = vdwg.mxu0
        %596 = vmatpush.bf16.msra.mxu0 %v442
        %597 = vmatpush.bf16.msra.mxu0 %v440
        %598 = vmatpush.bf16.msra.mxu0 %v438
        %599 = vmatpush.bf16.msra.mxu0 %v436
        %600 = vmatpush.bf16.msra.mxu0 %v434
        %601 = vmatpush.bf16.msra.mxu0 %v432
        %602 = vmatpush.bf16.msra.mxu0 %v430
        %603 = vmatpush.bf16.msra.mxu0 %v428
        %604 = vmatmul.bf16.gmra.mxu0 %v330
        %v605 = vpop.f32.mrf.mxu0
        %v606 = vadd.f32 0.0, %v605
        %v607 = vpop.f32.mrf.mxu0
        %608 = vdwg.mxu0
        %609 = vmatpush.bf16.msra.mxu0 %v458
        %610 = vmatpush.bf16.msra.mxu0 %v456
        %611 = vmatpush.bf16.msra.mxu0 %v454
        %612 = vmatpush.bf16.msra.mxu0 %v452
        %613 = vmatpush.bf16.msra.mxu0 %v450
        %614 = vmatpush.bf16.msra.mxu0 %v448
        %615 = vmatpush.bf16.msra.mxu0 %v446
        %616 = vmatpush.bf16.msra.mxu0 %v444
        %617 = vmatmul.bf16.gmra.mxu0 %v331
        %v618 = vpop.f32.mrf.mxu0
        %v619 = vadd.f32 %v606, %v618
        %v620 = vpop.f32.mrf.mxu0
        %621 = vdwg.mxu0
        %622 = vmatpush.bf16.msra.mxu0 %v443
        %623 = vmatpush.bf16.msra.mxu0 %v441
        %624 = vmatpush.bf16.msra.mxu0 %v439
        %625 = vmatpush.bf16.msra.mxu0 %v437
        %626 = vmatpush.bf16.msra.mxu0 %v435
        %627 = vmatpush.bf16.msra.mxu0 %v433
        %628 = vmatpush.bf16.msra.mxu0 %v431
        %629 = vmatpush.bf16.msra.mxu0 %v429
        %630 = vmatmul.bf16.gmra.mxu0 %v330
        %v631 = vpop.f32.mrf.mxu0
        %v632 = vadd.f32 0.0, %v631
        %v633 = vpop.f32.mrf.mxu0
        %634 = vdwg.mxu0
        %635 = vmatpush.bf16.msra.mxu0 %v459
        %636 = vmatpush.bf16.msra.mxu0 %v457
        %637 = vmatpush.bf16.msra.mxu0 %v455
        %638 = vmatpush.bf16.msra.mxu0 %v453
        %639 = vmatpush.bf16.msra.mxu0 %v451
        %640 = vmatpush.bf16.msra.mxu0 %v449
        %641 = vmatpush.bf16.msra.mxu0 %v447
        %642 = vmatpush.bf16.msra.mxu0 %v445
        %643 = vmatmul.bf16.gmra.mxu0 %v331
        %v644 = vpop.f32.mrf.mxu0
        %v645 = vadd.f32 %v632, %v644
        %v646 = vpop.f32.mrf.mxu0
        %647 = vdwg.mxu0
        %v648 = vadd.f32 %v567, %v619
        %v649 = vadd.f32 %v593, %v645
        %v650 = vld [vmem:[%s2] sm:$0x1]
        %v652 = vperm.slane %v650, 0
        %v654 = vmul.f32 %v652, %v277
        %655 = vst [vmem:[%s260] sm:$0xff] %v648
        %v656 = vadd.f32 %v649, %v654
        %657 = vst [vmem:[%s260 + $0x8] sm:$0xff] %v656
        %s658 = sand.u32 %s142, 1
        %s659 = scalar_lea.sflag [#allocation5], %s658
        %s660 = sand.u32 %s142, 1
        %s661 = smul.addr %s660, 16
        %s662 = scalar_lea.vmem [#allocation8], %s661
        // Predicated region
        $region49: #{tpu_custom_call.1} parent=39 // pred_check
          %p663 = pneg %p152
        $region50: #{tpu_custom_call.1} parent=39 // pred_check_branch
          %665 = sbr.rel (%p663) target = $region52
        $region51: #{tpu_custom_call.1} parent=39 // pred_region
          %667 = vsyncadd %s659, 0
          %s668 = smul.addr %s24, 2
          %s669 = smul.addr %s668, 8
          %s670 = scalar_lea.hbm %s5, %s669
          %s672 = sshll.u32 %s662, 4
          %s673 = int_to_ptr.vmem [resolvable:$true] %s672
          %s674 = sshll.u32 %s670, 4
          %s675 = int_to_ptr.hbm [resolvable:$true] %s674
          %677 = dma.vmem_to_hbm [thread:$0]  %s673, 256, %s675, %s659
        $region52: #{tpu_custom_call.1} parent=39 // pred_fallthru
          _
      $region40: #{tpu_custom_call.1} parent=5 // pred_fallthru
        _
      %p678 = scmp.le.s32.totalorder 2, %s19
      // Predicated region
      $region53: #{tpu_custom_call.1} parent=5 // pred_check
        %p679 = pneg %p678
      $region54: #{tpu_custom_call.1} parent=5 // pred_check_branch
        %681 = sbr.rel (%p679) target = $region56
      $region55: #{tpu_custom_call.1} parent=5 // pred_region
        %s682 = ssub.s32 %s19, 2
        // Predicated region
        $region57: #{tpu_custom_call.1} parent=55 // pred_check
          %p683 = pneg %p158
        $region58: #{tpu_custom_call.1} parent=55 // pred_check_branch
          %685 = sbr.rel (%p683) target = $region60
        $region59: #{tpu_custom_call.1} parent=55 // pred_region
          %s686 = sand.u32 %s143, 1
          %s687 = scalar_lea.sflag [#allocation5], %s686
          %s688 = sand.u32 %s143, 1
          %s689 = smul.addr %s688, 16
          %s690 = scalar_lea.vmem [#allocation8], %s689
          %692 = dma.done %s687, 256
        $region60: #{tpu_custom_call.1} parent=55 // pred_fallthru
          _
      $region56: #{tpu_custom_call.1} parent=5 // pred_fallthru
        _
    $region6: #{tpu_custom_call.1} parent=1 // loop_footer
      %s23 = sadd.s32 1, %s19
    $region7: #{tpu_custom_call.1} parent=1 // loop_footer_branch
      %18 = sbr.rel target = $region3
    $region8: #{tpu_custom_call.1} parent=1 // loop_exit
      _
    %693 = vsyncpa [#allocation4], 1
    %s694 = scalar_lea.sflag [#allocation4], 1
    %695 = vsyncpa %s694, 1
    %696 = vsyncpa [#allocation7], 1
    %697 = vsyncpa [#allocation5], 1
    %s698 = scalar_lea.sflag [#allocation5], 1
    %699 = vsyncpa %s698, 1

</llo_original>
